<compile_context>
chip_gen: v7x
topology: tpu7x:2x2x1
jax: 0.10.0
libtpu: 0.0.40
codegen_flags: <defaults>
</compile_context>

<pallas_src>
import functools

import jax
import jax.numpy as jnp
from jax.experimental import pallas as pl
from jax.experimental.pallas import tpu as pltpu


def _cae_fused_kernel(x_ref, menc_ref, benc_ref, mdec_ref, bdec_ref, o_ref, *, h):
    """Fused encoder(conv3x3+ReLU) -> decoder(conv3x3+Sigmoid) for one row-slab.

    x_ref    : (M, LCin)         M = groups_per_step*H rows, LCin = pack*W*Cin lanes
    menc_ref : (3, LCin, LChid)  banded block-diagonal encoder weights (per dy tap)
    benc_ref : (1, LChid)        encoder bias tiled over pack*W
    mdec_ref : (3, LChid, LCout) banded block-diagonal decoder weights
    bdec_ref : (1, LCout)        decoder bias tiled over pack*W
    o_ref    : (M, LCout)        lane-dense output slab
    """
    m_rows = x_ref.shape[0]

    # Vertical one-row shift matrices (hoisted, built once per grid step, trivial VPU
    # work). (S_down @ a)[y] = a[y-1] with zeros flowing in at each image's top row;
    # (S_up @ a)[y] = a[y+1] with zeros at each image's bottom row.  This replaces the
    # halo-padded VMEM scratch + unaligned row slices of the previous version.
    row = jax.lax.broadcasted_iota(jnp.int32, (m_rows, m_rows), 0)
    col = jax.lax.broadcasted_iota(jnp.int32, (m_rows, m_rows), 1)
    down = col == row - 1
    up = col == row + 1
    if m_rows != h:  # several images stacked along rows: block the inter-image leak
        down = down & ((row % h) != 0)
        up = up & ((row % h) != (h - 1))
    s_down = down.astype(jnp.float32)
    s_up = up.astype(jnp.float32)

    def conv3x3(act, m_ref, bias):
        a_down = jnp.dot(s_down, act, preferred_element_type=jnp.float32)
        a_up = jnp.dot(s_up, act, preferred_element_type=jnp.float32)
        return (jnp.dot(a_down, m_ref[0], preferred_element_type=jnp.float32)
                + jnp.dot(act, m_ref[1], preferred_element_type=jnp.float32)
                + jnp.dot(a_up, m_ref[2], preferred_element_type=jnp.float32)
                + bias)

    x = x_ref[...].astype(jnp.float32)
    hid = jnp.maximum(conv3x3(x, menc_ref, benc_ref[...]), 0.0)   # encoder + ReLU
    dec = conv3x3(hid, mdec_ref, bdec_ref[...])                   # decoder
    o_ref[...] = jax.nn.sigmoid(dec).astype(o_ref.dtype)


def _band_weights(w_hwio, width, pack):
    """Fold the 3 horizontal taps + horizontal zero padding into banded matrices,
    then block-diagonalize over `pack` lane-packed images.

    w_hwio: (3, 3, Cin, Cout) -> (3, pack*W*Cin, pack*W*Cout), one matrix per dy tap:
        M[dy][(x+dx-1)*Cin + ci, x*Cout + co] = w[dy, dx, ci, co]   (0 <= x+dx-1 < W)
    """
    kh, kw, cin, cout = w_hwio.shape
    mats = []
    for dy in range(kh):
        m = jnp.zeros((width * cin, width * cout), jnp.float32)
        for dx in range(kw):
            shift = jnp.eye(width, k=1 - dx, dtype=jnp.float32)   # S[x+dx-1, x] = 1
            m = m + jnp.kron(shift, w_hwio[dy, dx].astype(jnp.float32))
        if pack > 1:
            m = jnp.kron(jnp.eye(pack, dtype=jnp.float32), m)     # block-diag per image
        mats.append(m)
    return jnp.stack(mats, axis=0)


def prepare_cae_params(params, width, pack):
    """Build banded block-diagonal weights / tiled biases ONCE (outside the hot path)."""
    c_hid = params["w_enc"].shape[-1]
    c_out = params["w_dec"].shape[-1]
    return {
        "m_enc": _band_weights(params["w_enc"], width, pack),
        "m_dec": _band_weights(params["w_dec"], width, pack),
        "b_enc": jnp.tile(params["b_enc"].astype(jnp.float32),
                          pack * width).reshape(1, pack * width * c_hid),
        "b_dec": jnp.tile(params["b_dec"].astype(jnp.float32),
                          pack * width).reshape(1, pack * width * c_out),
    }


def autoencoder_forward(x_nchw, prep, *, groups_per_step=None):
    """decoded = decoder(encoder(x)) — matches Autoencoder.forward (NCHW in/out).

    groups_per_step:
      None        -> whole batch in one grid step (best on single-TC v5e/v6e)
      g_total//2  -> grid=(2,), one step per TensorCore on v7x
    """
    N, c_in, H, W = x_nchw.shape
    m_enc, m_dec = prep["m_enc"], prep["m_dec"]
    b_enc, b_dec = prep["b_enc"], prep["b_dec"]

    pack = m_enc.shape[1] // (W * c_in)
    lcin = pack * W * c_in
    lchid = m_enc.shape[2]
    lcout = m_dec.shape[2]
    c_out = lcout // (pack * W)
    assert N % pack == 0, "batch must be divisible by the lane-pack factor"

    g_total = N // pack                                   # image groups (pack per group)
    G = g_total if groups_per_step is None else groups_per_step
    assert g_total % G == 0, "groups_per_step must divide the number of image groups"
    grid = (g_total // G,)
    m_rows = G * H

    # NCHW -> lane-packed 2-D slab (g_total*H, pack*W*Cin).  (These relayouts exist
    # only because the spec's I/O is NCHW; keep I/O NHWC end-to-end to drop them.)
    x = jnp.transpose(x_nchw, (0, 2, 3, 1))               # (N, H, W, Cin)
    x = x.reshape(g_total, pack, H, W * c_in)
    x = jnp.transpose(x, (0, 2, 1, 3)).reshape(g_total * H, lcin)

    out2d = pl.pallas_call(
        functools.partial(_cae_fused_kernel, h=H),
        out_shape=jax.ShapeDtypeStruct((g_total * H, lcout), x_nchw.dtype),
        grid=grid,
        in_specs=[
            pl.BlockSpec((m_rows, lcin), lambda n: (n, 0)),
            pl.BlockSpec((3, lcin, lchid), lambda n: (0, 0, 0)),
            pl.BlockSpec((1, lchid), lambda n: (0, 0)),
            pl.BlockSpec((3, lchid, lcout), lambda n: (0, 0, 0)),
            pl.BlockSpec((1, lcout), lambda n: (0, 0)),
        ],
        out_specs=pl.BlockSpec((m_rows, lcout), lambda n: (n, 0)),
        compiler_params=pltpu.CompilerParams(dimension_semantics=("parallel",)),
    )(x, m_enc, b_enc, m_dec, b_dec)

    # lane-packed slab -> NHWC -> NCHW
    o = out2d.reshape(g_total, H, pack, W, c_out)
    o = jnp.transpose(o, (0, 2, 1, 3, 4)).reshape(N, H, W, c_out)
    return jnp.transpose(o, (0, 3, 1, 2))


def init_params(key, c_in, c_hidden, k=3):
    """Deterministic init mimicking PyTorch Conv2d default (uniform +-1/sqrt(fan_in))."""
    k1, k2, k3, k4 = jax.random.split(key, 4)

    def conv_init(kw, kb, cin, cout):
        bound = 1.0 / jnp.sqrt(jnp.float32(cin * k * k))
        w_oihw = jax.random.uniform(kw, (cout, cin, k, k), jnp.float32, -bound, bound)
        w_hwio = jnp.transpose(w_oihw, (2, 3, 1, 0))
        b = jax.random.uniform(kb, (cout,), jnp.float32, -bound, bound)
        return w_hwio, b

    w_enc, b_enc = conv_init(k1, k2, c_in, c_hidden)
    w_dec, b_dec = conv_init(k3, k4, c_hidden, c_in)
    return {"w_enc": w_enc, "b_enc": b_enc, "w_dec": w_dec, "b_dec": b_dec}


def _reference_forward(x_nchw, params):
    """Pure-JAX reference (lax conv) for correctness check."""
    x = jnp.transpose(x_nchw, (0, 2, 3, 1))
    dn = jax.lax.conv_dimension_numbers(x.shape, params["w_enc"].shape,
                                        ("NHWC", "HWIO", "NHWC"))
    enc = jax.lax.conv_general_dilated(x, params["w_enc"], (1, 1), "SAME",
                                       dimension_numbers=dn)
    enc = jnp.maximum(enc + params["b_enc"], 0.0)
    dn2 = jax.lax.conv_dimension_numbers(enc.shape, params["w_dec"].shape,
                                         ("NHWC", "HWIO", "NHWC"))
    dec = jax.lax.conv_general_dilated(enc, params["w_dec"], (1, 1), "SAME",
                                       dimension_numbers=dn2)
    dec = jax.nn.sigmoid(dec + params["b_dec"])
    return jnp.transpose(dec, (0, 3, 1, 2))


if __name__ == "__main__":
    key = jax.random.PRNGKey(0)
    kx, kp = jax.random.split(key)

    N, C, H, W = 2, 4, 16, 16
    C_HIDDEN = 8

    x = jax.random.normal(kx, (N, C, H, W), jnp.float32)      # NCHW like PyTorch
    params = init_params(kp, C, C_HIDDEN)

    # Lane-pack 2 images per group: encoder matmul (M,128)x(128,256), decoder
    # (M,256)x(256,128), output block 128 lanes wide.  Prepared ONCE.
    PACK = 2 if N % 2 == 0 else 1
    prep = prepare_cae_params(params, W, PACK)
    prep = jax.tree_util.tree_map(jax.block_until_ready, prep)

    # groups_per_step=None -> whole batch in a single grid step (v5e/v6e friendly).
    # On v7x with larger batches, pass groups_per_step = (N // PACK) // 2.
    fwd = jax.jit(functools.partial(autoencoder_forward, groups_per_step=None))
    out = jax.block_until_ready(fwd(x, prep))

    ref = jax.block_until_ready(_reference_forward(x, params))
    assert out.shape == (N, C, H, W) and out.dtype == jnp.float32
    err = float(jnp.max(jnp.abs(out - ref)))
    assert jnp.allclose(out, ref, atol=1e-5, rtol=1e-5), err

    print("KERNEL_OK")
</pallas_src>

<mosaic_0001>
module attributes {stable_mosaic.version = 11 : i64} {
  func.func @_cae_fused_kernel(%arg0: i32, %arg1: memref<16x128xf32, #tpu.memory_space<vmem>>, %arg2: memref<3x128x256xf32, #tpu.memory_space<vmem>>, %arg3: memref<1x256xf32, #tpu.memory_space<vmem>>, %arg4: memref<3x256x128xf32, #tpu.memory_space<vmem>>, %arg5: memref<1x128xf32, #tpu.memory_space<vmem>>, %arg6: memref<16x128xf32, #tpu.memory_space<vmem>>) attributes {dimension_semantics = [#tpu.dimension_semantics<parallel>], iteration_bounds = array<i64: 1>, scalar_prefetch = 0 : i64, scratch_operands = 0 : i64, tpu.core_type = #tpu.core_type<tc>, window_params = [{transform_indices = @transform_0, window_bounds = array<i64: 16, 128>}, {pipeline_mode = #tpu.pipeline_mode<synchronous>, transform_indices = @transform_1, window_bounds = array<i64: 3, 128, 256>}, {pipeline_mode = #tpu.pipeline_mode<synchronous>, transform_indices = @transform_2, window_bounds = array<i64: 1, 256>}, {pipeline_mode = #tpu.pipeline_mode<synchronous>, transform_indices = @transform_3, window_bounds = array<i64: 3, 256, 128>}, {pipeline_mode = #tpu.pipeline_mode<synchronous>, transform_indices = @transform_4, window_bounds = array<i64: 1, 128>}, {transform_indices = @transform_5, window_bounds = array<i64: 16, 128>}]} {
    %0 = tpu.iota {dimensions = array<i32: 0>} : vector<16x16xi32>
    %1 = tpu.iota {dimensions = array<i32: 1>} : vector<16x16xi32>
    %c1_i32 = arith.constant 1 : i32
    %2 = vector.broadcast %c1_i32 : i32 to vector<16x16xi32>
    %3 = arith.subi %0, %2 : vector<16x16xi32>
    %4 = arith.cmpi eq, %1, %3 : vector<16x16xi32>
    %c1_i32_0 = arith.constant 1 : i32
    %5 = vector.broadcast %c1_i32_0 : i32 to vector<16x16xi32>
    %6 = arith.addi %0, %5 : vector<16x16xi32>
    %7 = arith.cmpi eq, %1, %6 : vector<16x16xi32>
    %8 = arith.extui %4 : vector<16x16xi1> to vector<16x16xi32>
    %9 = arith.sitofp %8 : vector<16x16xi32> to vector<16x16xf32>
    %10 = arith.extui %7 : vector<16x16xi1> to vector<16x16xi32>
    %11 = arith.sitofp %10 : vector<16x16xi32> to vector<16x16xf32>
    %c0 = arith.constant 0 : index
    %c0_1 = arith.constant 0 : index
    %12 = vector.load %arg1[%c0, %c0_1] : memref<16x128xf32, #tpu.memory_space<vmem>>, vector<16x128xf32>
    %c0_2 = arith.constant 0 : index
    %c0_3 = arith.constant 0 : index
    %13 = vector.load %arg3[%c0_2, %c0_3] : memref<1x256xf32, #tpu.memory_space<vmem>>, vector<1x256xf32>
    %cst = arith.constant dense<0.000000e+00> : vector<16x128xf32>
    %14 = tpu.matmul %9, %12, %cst {dimension_numbers = #tpu.dot_dimension_numbers<[1], [0], [0], [1], [0, 0, 1, 1], [], []>} : vector<16x16xf32>, vector<16x128xf32>, vector<16x128xf32> -> vector<16x128xf32>
    %cst_4 = arith.constant dense<0.000000e+00> : vector<16x128xf32>
    %15 = tpu.matmul %11, %12, %cst_4 {dimension_numbers = #tpu.dot_dimension_numbers<[1], [0], [0], [1], [0, 0, 1, 1], [], []>} : vector<16x16xf32>, vector<16x128xf32>, vector<16x128xf32> -> vector<16x128xf32>
    %c0_5 = arith.constant 0 : index
    %c0_6 = arith.constant 0 : index
    %c0_7 = arith.constant 0 : index
    %16 = vector.load %arg2[%c0_5, %c0_6, %c0_7] : memref<3x128x256xf32, #tpu.memory_space<vmem>>, vector<1x128x256xf32>
    %17 = vector.shape_cast %16 : vector<1x128x256xf32> to vector<128x256xf32>
    %cst_8 = arith.constant dense<0.000000e+00> : vector<16x256xf32>
    %18 = tpu.matmul %14, %17, %cst_8 {dimension_numbers = #tpu.dot_dimension_numbers<[1], [0], [0], [1], [0, 0, 1, 1], [], []>} : vector<16x128xf32>, vector<128x256xf32>, vector<16x256xf32> -> vector<16x256xf32>
    %c1 = arith.constant 1 : index
    %c0_9 = arith.constant 0 : index
    %c0_10 = arith.constant 0 : index
    %19 = vector.load %arg2[%c1, %c0_9, %c0_10] : memref<3x128x256xf32, #tpu.memory_space<vmem>>, vector<1x128x256xf32>
    %20 = vector.shape_cast %19 : vector<1x128x256xf32> to vector<128x256xf32>
    %cst_11 = arith.constant dense<0.000000e+00> : vector<16x256xf32>
    %21 = tpu.matmul %12, %20, %cst_11 {dimension_numbers = #tpu.dot_dimension_numbers<[1], [0], [0], [1], [0, 0, 1, 1], [], []>} : vector<16x128xf32>, vector<128x256xf32>, vector<16x256xf32> -> vector<16x256xf32>
    %22 = arith.addf %18, %21 : vector<16x256xf32>
    %c2 = arith.constant 2 : index
    %c0_12 = arith.constant 0 : index
    %c0_13 = arith.constant 0 : index
    %23 = vector.load %arg2[%c2, %c0_12, %c0_13] : memref<3x128x256xf32, #tpu.memory_space<vmem>>, vector<1x128x256xf32>
    %24 = vector.shape_cast %23 : vector<1x128x256xf32> to vector<128x256xf32>
    %cst_14 = arith.constant dense<0.000000e+00> : vector<16x256xf32>
    %25 = tpu.matmul %15, %24, %cst_14 {dimension_numbers = #tpu.dot_dimension_numbers<[1], [0], [0], [1], [0, 0, 1, 1], [], []>} : vector<16x128xf32>, vector<128x256xf32>, vector<16x256xf32> -> vector<16x256xf32>
    %26 = arith.addf %22, %25 : vector<16x256xf32>
    %27 = vector.broadcast %13 : vector<1x256xf32> to vector<16x256xf32>
    %28 = arith.addf %26, %27 : vector<16x256xf32>
    %cst_15 = arith.constant 0.000000e+00 : f32
    %29 = vector.broadcast %cst_15 : f32 to vector<16x256xf32>
    %30 = arith.maximumf %28, %29 : vector<16x256xf32>
    %c0_16 = arith.constant 0 : index
    %c0_17 = arith.constant 0 : index
    %31 = vector.load %arg5[%c0_16, %c0_17] : memref<1x128xf32, #tpu.memory_space<vmem>>, vector<1x128xf32>
    %cst_18 = arith.constant dense<0.000000e+00> : vector<16x256xf32>
    %32 = tpu.matmul %9, %30, %cst_18 {dimension_numbers = #tpu.dot_dimension_numbers<[1], [0], [0], [1], [0, 0, 1, 1], [], []>} : vector<16x16xf32>, vector<16x256xf32>, vector<16x256xf32> -> vector<16x256xf32>
    %cst_19 = arith.constant dense<0.000000e+00> : vector<16x256xf32>
    %33 = tpu.matmul %11, %30, %cst_19 {dimension_numbers = #tpu.dot_dimension_numbers<[1], [0], [0], [1], [0, 0, 1, 1], [], []>} : vector<16x16xf32>, vector<16x256xf32>, vector<16x256xf32> -> vector<16x256xf32>
    %c0_20 = arith.constant 0 : index
    %c0_21 = arith.constant 0 : index
    %c0_22 = arith.constant 0 : index
    %34 = vector.load %arg4[%c0_20, %c0_21, %c0_22] : memref<3x256x128xf32, #tpu.memory_space<vmem>>, vector<1x256x128xf32>
    %35 = vector.shape_cast %34 : vector<1x256x128xf32> to vector<256x128xf32>
    %cst_23 = arith.constant dense<0.000000e+00> : vector<16x128xf32>
    %36 = tpu.matmul %32, %35, %cst_23 {dimension_numbers = #tpu.dot_dimension_numbers<[1], [0], [0], [1], [0, 0, 1, 1], [], []>} : vector<16x256xf32>, vector<256x128xf32>, vector<16x128xf32> -> vector<16x128xf32>
    %c1_24 = arith.constant 1 : index
    %c0_25 = arith.constant 0 : index
    %c0_26 = arith.constant 0 : index
    %37 = vector.load %arg4[%c1_24, %c0_25, %c0_26] : memref<3x256x128xf32, #tpu.memory_space<vmem>>, vector<1x256x128xf32>
    %38 = vector.shape_cast %37 : vector<1x256x128xf32> to vector<256x128xf32>
    %cst_27 = arith.constant dense<0.000000e+00> : vector<16x128xf32>
    %39 = tpu.matmul %30, %38, %cst_27 {dimension_numbers = #tpu.dot_dimension_numbers<[1], [0], [0], [1], [0, 0, 1, 1], [], []>} : vector<16x256xf32>, vector<256x128xf32>, vector<16x128xf32> -> vector<16x128xf32>
    %40 = arith.addf %36, %39 : vector<16x128xf32>
    %c2_28 = arith.constant 2 : index
    %c0_29 = arith.constant 0 : index
    %c0_30 = arith.constant 0 : index
    %41 = vector.load %arg4[%c2_28, %c0_29, %c0_30] : memref<3x256x128xf32, #tpu.memory_space<vmem>>, vector<1x256x128xf32>
    %42 = vector.shape_cast %41 : vector<1x256x128xf32> to vector<256x128xf32>
    %cst_31 = arith.constant dense<0.000000e+00> : vector<16x128xf32>
    %43 = tpu.matmul %33, %42, %cst_31 {dimension_numbers = #tpu.dot_dimension_numbers<[1], [0], [0], [1], [0, 0, 1, 1], [], []>} : vector<16x256xf32>, vector<256x128xf32>, vector<16x128xf32> -> vector<16x128xf32>
    %44 = arith.addf %40, %43 : vector<16x128xf32>
    %45 = vector.broadcast %31 : vector<1x128xf32> to vector<16x128xf32>
    %46 = arith.addf %44, %45 : vector<16x128xf32>
    %47 = arith.negf %46 : vector<16x128xf32>
    %48 = math.exp %47 : vector<16x128xf32>
    %cst_32 = arith.constant 1.000000e+00 : f32
    %49 = vector.broadcast %cst_32 : f32 to vector<16x128xf32>
    %50 = arith.addf %49, %48 : vector<16x128xf32>
    %51 = arith.divf %49, %50 : vector<16x128xf32>
    %c0_33 = arith.constant 0 : index
    %c0_34 = arith.constant 0 : index
    %52 = vector.load %arg6[%c0_33, %c0_34] : memref<16x128xf32, #tpu.memory_space<vmem>>, vector<16x128xf32>
    tpu.vector_store %arg6[%c0_33, %c0_34], %51 {strides = array<i32>} : memref<16x128xf32, #tpu.memory_space<vmem>>, vector<16x128xf32>,
    return
  }
  func.func @transform_0(%arg0: i32) -> (i32, i32) {
    %c0_i32 = arith.constant 0 : i32
    %c0_i32_0 = arith.constant 0 : i32
    return %arg0, %c0_i32 : i32, i32
  }
  func.func @transform_1(%arg0: i32) -> (i32, i32, i32) {
    %c0_i32 = arith.constant 0 : i32
    %c0_i32_0 = arith.constant 0 : i32
    %c0_i32_1 = arith.constant 0 : i32
    %c0_i32_2 = arith.constant 0 : i32
    return %c0_i32, %c0_i32_0, %c0_i32_1 : i32, i32, i32
  }
  func.func @transform_2(%arg0: i32) -> (i32, i32) {
    %c0_i32 = arith.constant 0 : i32
    %c0_i32_0 = arith.constant 0 : i32
    %c0_i32_1 = arith.constant 0 : i32
    return %c0_i32, %c0_i32_0 : i32, i32
  }
  func.func @transform_3(%arg0: i32) -> (i32, i32, i32) {
    %c0_i32 = arith.constant 0 : i32
    %c0_i32_0 = arith.constant 0 : i32
    %c0_i32_1 = arith.constant 0 : i32
    %c0_i32_2 = arith.constant 0 : i32
    return %c0_i32, %c0_i32_0, %c0_i32_1 : i32, i32, i32
  }
  func.func @transform_4(%arg0: i32) -> (i32, i32) {
    %c0_i32 = arith.constant 0 : i32
    %c0_i32_0 = arith.constant 0 : i32
    %c0_i32_1 = arith.constant 0 : i32
    return %c0_i32, %c0_i32_0 : i32, i32
  }
  func.func @transform_5(%arg0: i32) -> (i32, i32) {
    %c0_i32 = arith.constant 0 : i32
    %c0_i32_0 = arith.constant 0 : i32
    return %arg0, %c0_i32 : i32, i32
  }
}

</mosaic_0001>

<llo_original>
// kernel: autoencoder_forward.1
$region0: #{autoencoder_forward.1}
  #allocation0 [shape = 'u32[]', space=smem, size = 0x4, offset = 0x4, fixed_abs, tag = 'smem constant byte address 0x4 - core index']
  #allocation1 [shape = 'u32[144,128]{1,0:T(1,128)}', space=vmem, size = 0x12000, scoped, tag = 'internal scratch']
  %s0 = inlined_call_operand.vmem [shape: f32[16,128], index: 0, kind: input, shape index: {}]
  %s1 = inlined_call_operand.hbm [shape: f32[3,128,256], index: 1, kind: input, shape index: {}]
  %s2 = inlined_call_operand.vmem [shape: f32[1,256], index: 2, kind: input, shape index: {}]
  %s3 = inlined_call_operand.hbm [shape: f32[3,256,128], index: 3, kind: input, shape index: {}]
  %s4 = inlined_call_operand.vmem [shape: f32[1,128], index: 4, kind: input, shape index: {}]
  %s5 = inlined_call_operand.vmem [shape: f32[16,128], index: 5, kind: output, shape index: {}]
  %s6 = sld [smem:[#allocation0]]
  $region38: #{autoencoder_forward.1} parent=0
    _
  %s8 = ssub.s32 1, %s6
  %s9 = scalar_select 0, %s8, %s6
  $region1: #{autoencoder_forward.1} parent=0
    #allocation2 [shape = 'u8[393216]{0}', space=vmem, size = 0x60000, scoped, tag = 'input window, operand 1, single buffered']
    #allocation3 [shape = 's32[1]{0}', space=sflag, size = 0x4, scoped, tag = 'scoped memory for autoencoder_forward.1']
    #allocation4 [shape = 'u8[393216]{0}', space=vmem, size = 0x60000, scoped, tag = 'input window, operand 3, single buffered']
    #allocation5 [shape = 's32[1]{0}', space=sflag, size = 0x4, scoped, tag = 'scoped memory for autoencoder_forward.1']
    %10 = vsyncpa [#allocation3], 0
    %11 = vsyncpa [#allocation5], 0
    // Predicated region
    $region2: #{autoencoder_forward.1} parent=1 // pred_check
      _
    $region3: #{autoencoder_forward.1} parent=1 // pred_check_branch
      %13 = sbr.rel (0) target = $region5
    $region4: #{autoencoder_forward.1} parent=1 // pred_region
      _
    $region5: #{autoencoder_forward.1} parent=1 // pred_fallthru
      _
    // Predicated region
    $region6: #{autoencoder_forward.1} parent=1 // pred_check
      _
    $region7: #{autoencoder_forward.1} parent=1 // pred_check_branch
      %15 = sbr.rel (0) target = $region9
    $region8: #{autoencoder_forward.1} parent=1 // pred_region
      %s17 = ssub.s32 12288, 12288
      %18 = vsyncadd [#allocation3], %s17
      %s19 = sshll.u32 [#allocation2], 4
      %s20 = int_to_ptr.vmem [resolvable:$true] %s19
      %25 = dma.hbm_to_vmem [thread:$0]  %s1, 12288, %s20, [#allocation3], 256, 256, 16
    $region9: #{autoencoder_forward.1} parent=1 // pred_fallthru
      _
    // Predicated region
    $region10: #{autoencoder_forward.1} parent=1 // pred_check
      _
    $region11: #{autoencoder_forward.1} parent=1 // pred_check_branch
      %27 = sbr.rel (0) target = $region13
    $region12: #{autoencoder_forward.1} parent=1 // pred_region
      _
    $region13: #{autoencoder_forward.1} parent=1 // pred_fallthru
      _
    // Predicated region
    $region14: #{autoencoder_forward.1} parent=1 // pred_check
      _
    $region15: #{autoencoder_forward.1} parent=1 // pred_check_branch
      %29 = sbr.rel (0) target = $region17
    $region16: #{autoencoder_forward.1} parent=1 // pred_region
      %s31 = ssub.s32 12288, 12288
      %32 = vsyncadd [#allocation5], %s31
      %s33 = sshll.u32 [#allocation4], 4
      %s34 = int_to_ptr.vmem [resolvable:$true] %s33
      %39 = dma.hbm_to_vmem [thread:$0]  %s3, 12288, %s34, [#allocation5], 128, 128, 8
    $region17: #{autoencoder_forward.1} parent=1 // pred_fallthru
      _
    // Predicated region
    $region18: #{autoencoder_forward.1} parent=1 // pred_check
      _
    $region19: #{autoencoder_forward.1} parent=1 // pred_check_branch
      %41 = sbr.rel (0) target = $region21
    $region20: #{autoencoder_forward.1} parent=1 // pred_region
      _
    $region21: #{autoencoder_forward.1} parent=1 // pred_fallthru
      _
    // Predicated region
    $region22: #{autoencoder_forward.1} parent=1 // pred_check
      _
    $region23: #{autoencoder_forward.1} parent=1 // pred_check_branch
      %43 = sbr.rel (0) target = $region25
    $region24: #{autoencoder_forward.1} parent=1 // pred_region
      %44 = dma.done [#allocation3], 12288
    $region25: #{autoencoder_forward.1} parent=1 // pred_fallthru
      _
    // Predicated region
    $region26: #{autoencoder_forward.1} parent=1 // pred_check
      _
    $region27: #{autoencoder_forward.1} parent=1 // pred_check_branch
      %46 = sbr.rel (0) target = $region29
    $region28: #{autoencoder_forward.1} parent=1 // pred_region
      %47 = dma.done [#allocation5], 12288
    $region29: #{autoencoder_forward.1} parent=1 // pred_fallthru
      _
    %v48 = vlaneseq
    %v49 = vshrl.u32 %v48, 7
    %v50 = vadd.s32 %v49, 8
    %v51 = vlaneseq
    %v52 = vand.u32 %v51, 127
    %v53 = vsub.s32 %v49, 1
    %v54 = vsub.s32 %v50, 1
    %vm55 = vcmp.eq.s32.totalorder %v52, %v53
    %vm56 = vcmp.eq.s32.totalorder %v52, %v54
    %v57 = vadd.s32 %v49, 1
    %v58 = vadd.s32 %v50, 1
    %vm59 = vcmp.eq.s32.totalorder %v52, %v57
    %vm60 = vcmp.eq.s32.totalorder %v52, %v58
    %v61 = vsel %vm55, 1, 0
    %v62 = vsel %vm56, 1, 0
    %v63 = vcvt.s32.f32 %v61
    %v64 = vcvt.s32.f32 %v62
    %v65 = vsel %vm59, 1, 0
    %v66 = vsel %vm60, 1, 0
    %v67 = vcvt.s32.f32 %v65
    %v68 = vcvt.s32.f32 %v66
    %v69 = vld [vmem:[%s0] sm:$0xff]
    %v70 = vld [vmem:[%s0 + $0x8] sm:$0xff]
    %v71 = vld [vmem:[%s2] sm:$0x3]
    %vm72 = vcmask 130048
    %v74 = vsel %vm72, %v63, 0
    %v77 = vsel %vm72, %v64, 0
    %79 = vmatprep.subr.mxu0 0.0
    %80 = vmatpush1.msra.mxu0 %v69
    %81 = vmatprep.subr.mxu0 0.0
    %82 = vmatpush1.msra.mxu0 %v70
    %83 = vmatprep.subr.mxu0 0.0
    %84 = vmatpush1.msra.mxu0 0.0
    %85 = vmatprep.subr.mxu0 0.0
    %86 = vmatpush1.msra.mxu0 0.0
    %87 = vmatprep.subr.mxu0 0.0
    %88 = vmatpush1.msra.mxu0 0.0
    %89 = vmatprep.subr.mxu0 0.0
    %90 = vmatpush1.msra.mxu0 0.0
    %91 = vmatprep.subr.mxu0 0.0
    %92 = vmatpush1.msra.mxu0 0.0
    %93 = vmatprep.subr.mxu0 0.0
    %94 = vmatpush1.msra.mxu0 0.0
    %95 = vmatprep.subr.mxu0 0.0
    %96 = vmatpush1.msra.mxu0 0.0
    %97 = vmatprep.subr.mxu0 0.0
    %98 = vmatpush1.msra.mxu0 0.0
    %99 = vmatprep.subr.mxu0 0.0
    %100 = vmatpush1.msra.mxu0 0.0
    %101 = vmatprep.subr.mxu0 0.0
    %102 = vmatpush1.msra.mxu0 0.0
    %103 = vmatprep.subr.mxu0 0.0
    %104 = vmatpush1.msra.mxu0 0.0
    %105 = vmatprep.subr.mxu0 0.0
    %106 = vmatpush1.msra.mxu0 0.0
    %107 = vmatprep.subr.mxu0 0.0
    %108 = vmatpush1.msra.mxu0 0.0
    %109 = vmatprep.subr.mxu0 0.0
    %110 = vmatpush1.msra.mxu0 0.0
    %111 = vmatprep.subr.mxu0 0.0
    %112 = vmatpush1.msra.mxu0 0.0
    %113 = vmatprep.subr.mxu0 0.0
    %114 = vmatpush1.msra.mxu0 0.0
    %115 = vmatprep.subr.mxu0 0.0
    %116 = vmatpush1.msra.mxu0 0.0
    %117 = vmatprep.subr.mxu0 0.0
    %118 = vmatpush1.msra.mxu0 0.0
    %119 = vmatprep.subr.mxu0 0.0
    %120 = vmatpush1.msra.mxu0 0.0
    %121 = vmatprep.subr.mxu0 0.0
    %122 = vmatpush1.msra.mxu0 0.0
    %123 = vmatprep.subr.mxu0 0.0
    %124 = vmatpush1.msra.mxu0 0.0
    %125 = vmatprep.subr.mxu0 0.0
    %126 = vmatpush1.msra.mxu0 0.0
    %127 = vmatprep.subr.mxu0 0.0
    %128 = vmatpush1.msra.mxu0 0.0
    %129 = vmatprep.subr.mxu0 0.0
    %130 = vmatpush1.msra.mxu0 0.0
    %131 = vmatprep.subr.mxu0 0.0
    %132 = vmatpush1.msra.mxu0 0.0
    %133 = vmatprep.subr.mxu0 0.0
    %134 = vmatpush1.msra.mxu0 0.0
    %135 = vmatprep.subr.mxu0 0.0
    %136 = vmatpush1.msra.mxu0 0.0
    %137 = vmatprep.subr.mxu0 0.0
    %138 = vmatpush1.msra.mxu0 0.0
    %139 = vmatprep.subr.mxu0 0.0
    %140 = vmatpush1.msra.mxu0 0.0
    %141 = vmatprep.subr.mxu0 0.0
    %142 = vmatpush1.msra.mxu0 0.0
    %143 = vmatprep.mubr.f32.mxu0 0.0
    %144 = vmatmul.mubr.f32.gmra.mrb[0].mxu0 %v74
    %v145 = vpop.f32.mrb[0].mxu0
    %v146 = vadd.f32 0.0, %v145
    %v147 = vpop.f32.mrb[0].mxu0
    %148 = vmatprep.mubr.f32.mxu0 0.0
    %149 = vmatmul.mubr.f32.gmra.mrb[0].mxu0 %v77
    %v150 = vpop.f32.mrb[0].mxu0
    %v151 = vadd.f32 0.0, %v150
    %v152 = vpop.f32.mrb[0].mxu0
    %153 = vdwg.mxu0
    %v155 = vsel %vm72, %v67, 0
    %v158 = vsel %vm72, %v68, 0
    %160 = vmatprep.subr.mxu0 0.0
    %161 = vmatpush1.msra.mxu0 %v69
    %162 = vmatprep.subr.mxu0 0.0
    %163 = vmatpush1.msra.mxu0 %v70
    %164 = vmatprep.subr.mxu0 0.0
    %165 = vmatpush1.msra.mxu0 0.0
    %166 = vmatprep.subr.mxu0 0.0
    %167 = vmatpush1.msra.mxu0 0.0
    %168 = vmatprep.subr.mxu0 0.0
    %169 = vmatpush1.msra.mxu0 0.0
    %170 = vmatprep.subr.mxu0 0.0
    %171 = vmatpush1.msra.mxu0 0.0
    %172 = vmatprep.subr.mxu0 0.0
    %173 = vmatpush1.msra.mxu0 0.0
    %174 = vmatprep.subr.mxu0 0.0
    %175 = vmatpush1.msra.mxu0 0.0
    %176 = vmatprep.subr.mxu0 0.0
    %177 = vmatpush1.msra.mxu0 0.0
    %178 = vmatprep.subr.mxu0 0.0
    %179 = vmatpush1.msra.mxu0 0.0
    %180 = vmatprep.subr.mxu0 0.0
    %181 = vmatpush1.msra.mxu0 0.0
    %182 = vmatprep.subr.mxu0 0.0
    %183 = vmatpush1.msra.mxu0 0.0
    %184 = vmatprep.subr.mxu0 0.0
    %185 = vmatpush1.msra.mxu0 0.0
    %186 = vmatprep.subr.mxu0 0.0
    %187 = vmatpush1.msra.mxu0 0.0
    %188 = vmatprep.subr.mxu0 0.0
    %189 = vmatpush1.msra.mxu0 0.0
    %190 = vmatprep.subr.mxu0 0.0
    %191 = vmatpush1.msra.mxu0 0.0
    %192 = vmatprep.subr.mxu0 0.0
    %193 = vmatpush1.msra.mxu0 0.0
    %194 = vmatprep.subr.mxu0 0.0
    %195 = vmatpush1.msra.mxu0 0.0
    %196 = vmatprep.subr.mxu0 0.0
    %197 = vmatpush1.msra.mxu0 0.0
    %198 = vmatprep.subr.mxu0 0.0
    %199 = vmatpush1.msra.mxu0 0.0
    %200 = vmatprep.subr.mxu0 0.0
    %201 = vmatpush1.msra.mxu0 0.0
    %202 = vmatprep.subr.mxu0 0.0
    %203 = vmatpush1.msra.mxu0 0.0
    %204 = vmatprep.subr.mxu0 0.0
    %205 = vmatpush1.msra.mxu0 0.0
    %206 = vmatprep.subr.mxu0 0.0
    %207 = vmatpush1.msra.mxu0 0.0
    %208 = vmatprep.subr.mxu0 0.0
    %209 = vmatpush1.msra.mxu0 0.0
    %210 = vmatprep.subr.mxu0 0.0
    %211 = vmatpush1.msra.mxu0 0.0
    %212 = vmatprep.subr.mxu0 0.0
    %213 = vmatpush1.msra.mxu0 0.0
    %214 = vmatprep.subr.mxu0 0.0
    %215 = vmatpush1.msra.mxu0 0.0
    %216 = vmatprep.subr.mxu0 0.0
    %217 = vmatpush1.msra.mxu0 0.0
    %218 = vmatprep.subr.mxu0 0.0
    %219 = vmatpush1.msra.mxu0 0.0
    %220 = vmatprep.subr.mxu0 0.0
    %221 = vmatpush1.msra.mxu0 0.0
    %222 = vmatprep.subr.mxu0 0.0
    %223 = vmatpush1.msra.mxu0 0.0
    %224 = vmatprep.mubr.f32.mxu0 0.0
    %225 = vmatmul.mubr.f32.gmra.mrb[0].mxu0 %v155
    %v226 = vpop.f32.mrb[0].mxu0
    %v227 = vadd.f32 0.0, %v226
    %v228 = vpop.f32.mrb[0].mxu0
    %229 = vmatprep.mubr.f32.mxu0 0.0
    %230 = vmatmul.mubr.f32.gmra.mrb[0].mxu0 %v158
    %v231 = vpop.f32.mrb[0].mxu0
    %v232 = vadd.f32 0.0, %v231
    %v233 = vpop.f32.mrb[0].mxu0
    %234 = vdwg.mxu0
    %v235 = vld [vmem:[#allocation2] sm:$0xff]
    %v236 = vld [vmem:[#allocation2 + $0x8] sm:$0xff]
    %v237 = vld [vmem:[#allocation2 + $0x10] sm:$0xff]
    %v238 = vld [vmem:[#allocation2 + $0x18] sm:$0xff]
    %v239 = vld [vmem:[#allocation2 + $0x20] sm:$0xff]
    %v240 = vld [vmem:[#allocation2 + $0x28] sm:$0xff]
    %v241 = vld [vmem:[#allocation2 + $0x30] sm:$0xff]
    %v242 = vld [vmem:[#allocation2 + $0x38] sm:$0xff]
    %v243 = vld [vmem:[#allocation2 + $0x40] sm:$0xff]
    %v244 = vld [vmem:[#allocation2 + $0x48] sm:$0xff]
    %v245 = vld [vmem:[#allocation2 + $0x50] sm:$0xff]
    %v246 = vld [vmem:[#allocation2 + $0x58] sm:$0xff]
    %v247 = vld [vmem:[#allocation2 + $0x60] sm:$0xff]
    %v248 = vld [vmem:[#allocation2 + $0x68] sm:$0xff]
    %v249 = vld [vmem:[#allocation2 + $0x70] sm:$0xff]
    %v250 = vld [vmem:[#allocation2 + $0x78] sm:$0xff]
    %v251 = vld [vmem:[#allocation2 + $0x80] sm:$0xff]
    %v252 = vld [vmem:[#allocation2 + $0x88] sm:$0xff]
    %v253 = vld [vmem:[#allocation2 + $0x90] sm:$0xff]
    %v254 = vld [vmem:[#allocation2 + $0x98] sm:$0xff]
    %v255 = vld [vmem:[#allocation2 + $0xa0] sm:$0xff]
    %v256 = vld [vmem:[#allocation2 + $0xa8] sm:$0xff]
    %v257 = vld [vmem:[#allocation2 + $0xb0] sm:$0xff]
    %v258 = vld [vmem:[#allocation2 + $0xb8] sm:$0xff]
    %v259 = vld [vmem:[#allocation2 + $0xc0] sm:$0xff]
    %v260 = vld [vmem:[#allocation2 + $0xc8] sm:$0xff]
    %v261 = vld [vmem:[#allocation2 + $0xd0] sm:$0xff]
    %v262 = vld [vmem:[#allocation2 + $0xd8] sm:$0xff]
    %v263 = vld [vmem:[#allocation2 + $0xe0] sm:$0xff]
    %v264 = vld [vmem:[#allocation2 + $0xe8] sm:$0xff]
    %v265 = vld [vmem:[#allocation2 + $0xf0] sm:$0xff]
    %v266 = vld [vmem:[#allocation2 + $0xf8] sm:$0xff]
    %s267 = scalar_lea.vmem [#allocation2], 256
    %v268 = vld [vmem:[%s267] sm:$0xff]
    %v269 = vld [vmem:[%s267 + $0x8] sm:$0xff]
    %v270 = vld [vmem:[%s267 + $0x10] sm:$0xff]
    %v271 = vld [vmem:[%s267 + $0x18] sm:$0xff]
    %v272 = vld [vmem:[%s267 + $0x20] sm:$0xff]
    %v273 = vld [vmem:[%s267 + $0x28] sm:$0xff]
    %v274 = vld [vmem:[%s267 + $0x30] sm:$0xff]
    %v275 = vld [vmem:[%s267 + $0x38] sm:$0xff]
    %v276 = vld [vmem:[%s267 + $0x40] sm:$0xff]
    %v277 = vld [vmem:[%s267 + $0x48] sm:$0xff]
    %v278 = vld [vmem:[%s267 + $0x50] sm:$0xff]
    %v279 = vld [vmem:[%s267 + $0x58] sm:$0xff]
    %v280 = vld [vmem:[%s267 + $0x60] sm:$0xff]
    %v281 = vld [vmem:[%s267 + $0x68] sm:$0xff]
    %v282 = vld [vmem:[%s267 + $0x70] sm:$0xff]
    %v283 = vld [vmem:[%s267 + $0x78] sm:$0xff]
    %v284 = vld [vmem:[%s267 + $0x80] sm:$0xff]
    %v285 = vld [vmem:[%s267 + $0x88] sm:$0xff]
    %v286 = vld [vmem:[%s267 + $0x90] sm:$0xff]
    %v287 = vld [vmem:[%s267 + $0x98] sm:$0xff]
    %v288 = vld [vmem:[%s267 + $0xa0] sm:$0xff]
    %v289 = vld [vmem:[%s267 + $0xa8] sm:$0xff]
    %v290 = vld [vmem:[%s267 + $0xb0] sm:$0xff]
    %v291 = vld [vmem:[%s267 + $0xb8] sm:$0xff]
    %v292 = vld [vmem:[%s267 + $0xc0] sm:$0xff]
    %v293 = vld [vmem:[%s267 + $0xc8] sm:$0xff]
    %v294 = vld [vmem:[%s267 + $0xd0] sm:$0xff]
    %v295 = vld [vmem:[%s267 + $0xd8] sm:$0xff]
    %v296 = vld [vmem:[%s267 + $0xe0] sm:$0xff]
    %v297 = vld [vmem:[%s267 + $0xe8] sm:$0xff]
    %v298 = vld [vmem:[%s267 + $0xf0] sm:$0xff]
    %v299 = vld [vmem:[%s267 + $0xf8] sm:$0xff]
    %300 = vmatprep.subr.mxu0 %v269
    %301 = vmatpush1.msra.mxu0 %v268
    %302 = vmatprep.subr.mxu0 %v271
    %303 = vmatpush1.msra.mxu0 %v270
    %304 = vmatprep.subr.mxu0 %v273
    %305 = vmatpush1.msra.mxu0 %v272
    %306 = vmatprep.subr.mxu0 %v275
    %307 = vmatpush1.msra.mxu0 %v274
    %308 = vmatprep.subr.mxu0 %v277
    %309 = vmatpush1.msra.mxu0 %v276
    %310 = vmatprep.subr.mxu0 %v279
    %311 = vmatpush1.msra.mxu0 %v278
    %312 = vmatprep.subr.mxu0 %v281
    %313 = vmatpush1.msra.mxu0 %v280
    %314 = vmatprep.subr.mxu0 %v283
    %315 = vmatpush1.msra.mxu0 %v282
    %316 = vmatprep.subr.mxu0 %v285
    %317 = vmatpush1.msra.mxu0 %v284
    %318 = vmatprep.subr.mxu0 %v287
    %319 = vmatpush1.msra.mxu0 %v286
    %320 = vmatprep.subr.mxu0 %v289
    %321 = vmatpush1.msra.mxu0 %v288
    %322 = vmatprep.subr.mxu0 %v291
    %323 = vmatpush1.msra.mxu0 %v290
    %324 = vmatprep.subr.mxu0 %v293
    %325 = vmatpush1.msra.mxu0 %v292
    %326 = vmatprep.subr.mxu0 %v295
    %327 = vmatpush1.msra.mxu0 %v294
    %328 = vmatprep.subr.mxu0 %v297
    %329 = vmatpush1.msra.mxu0 %v296
    %330 = vmatprep.subr.mxu0 %v299
    %331 = vmatpush1.msra.mxu0 %v298
    %332 = vmatprep.subr.mxu0 0.0
    %333 = vmatpush1.msra.mxu0 0.0
    %334 = vmatprep.subr.mxu0 0.0
    %335 = vmatpush1.msra.mxu0 0.0
    %336 = vmatprep.subr.mxu0 0.0
    %337 = vmatpush1.msra.mxu0 0.0
    %338 = vmatprep.subr.mxu0 0.0
    %339 = vmatpush1.msra.mxu0 0.0
    %340 = vmatprep.subr.mxu0 0.0
    %341 = vmatpush1.msra.mxu0 0.0
    %342 = vmatprep.subr.mxu0 0.0
    %343 = vmatpush1.msra.mxu0 0.0
    %344 = vmatprep.subr.mxu0 0.0
    %345 = vmatpush1.msra.mxu0 0.0
    %346 = vmatprep.subr.mxu0 0.0
    %347 = vmatpush1.msra.mxu0 0.0
    %348 = vmatprep.subr.mxu0 0.0
    %349 = vmatpush1.msra.mxu0 0.0
    %350 = vmatprep.subr.mxu0 0.0
    %351 = vmatpush1.msra.mxu0 0.0
    %352 = vmatprep.subr.mxu0 0.0
    %353 = vmatpush1.msra.mxu0 0.0
    %354 = vmatprep.subr.mxu0 0.0
    %355 = vmatpush1.msra.mxu0 0.0
    %356 = vmatprep.subr.mxu0 0.0
    %357 = vmatpush1.msra.mxu0 0.0
    %358 = vmatprep.subr.mxu0 0.0
    %359 = vmatpush1.msra.mxu0 0.0
    %360 = vmatprep.subr.mxu0 0.0
    %361 = vmatpush1.msra.mxu0 0.0
    %362 = vmatprep.subr.mxu0 0.0
    %363 = vmatpush1.msra.mxu0 0.0
    %364 = vmatprep.mubr.f32.mxu0 0.0
    %365 = vmatmul.mubr.f32.gmra.mrb[0].mxu0 %v69
    %v366 = vpop.f32.mrb[0].mxu0
    %v367 = vadd.f32 0.0, %v366
    %v368 = vpop.f32.mrb[0].mxu0
    %v369 = vadd.f32 0.0, %v368
    %370 = vmatprep.mubr.f32.mxu0 0.0
    %371 = vmatmul.mubr.f32.gmra.mrb[0].mxu0 %v70
    %v372 = vpop.f32.mrb[0].mxu0
    %v373 = vadd.f32 0.0, %v372
    %v374 = vpop.f32.mrb[0].mxu0
    %v375 = vadd.f32 0.0, %v374
    %376 = vdwg.mxu0
    %377 = vmatprep.subr.mxu0 %v236
    %378 = vmatpush1.msra.mxu0 %v235
    %379 = vmatprep.subr.mxu0 %v238
    %380 = vmatpush1.msra.mxu0 %v237
    %381 = vmatprep.subr.mxu0 %v240
    %382 = vmatpush1.msra.mxu0 %v239
    %383 = vmatprep.subr.mxu0 %v242
    %384 = vmatpush1.msra.mxu0 %v241
    %385 = vmatprep.subr.mxu0 %v244
    %386 = vmatpush1.msra.mxu0 %v243
    %387 = vmatprep.subr.mxu0 %v246
    %388 = vmatpush1.msra.mxu0 %v245
    %389 = vmatprep.subr.mxu0 %v248
    %390 = vmatpush1.msra.mxu0 %v247
    %391 = vmatprep.subr.mxu0 %v250
    %392 = vmatpush1.msra.mxu0 %v249
    %393 = vmatprep.subr.mxu0 %v252
    %394 = vmatpush1.msra.mxu0 %v251
    %395 = vmatprep.subr.mxu0 %v254
    %396 = vmatpush1.msra.mxu0 %v253
    %397 = vmatprep.subr.mxu0 %v256
    %398 = vmatpush1.msra.mxu0 %v255
    %399 = vmatprep.subr.mxu0 %v258
    %400 = vmatpush1.msra.mxu0 %v257
    %401 = vmatprep.subr.mxu0 %v260
    %402 = vmatpush1.msra.mxu0 %v259
    %403 = vmatprep.subr.mxu0 %v262
    %404 = vmatpush1.msra.mxu0 %v261
    %405 = vmatprep.subr.mxu0 %v264
    %406 = vmatpush1.msra.mxu0 %v263
    %407 = vmatprep.subr.mxu0 %v266
    %408 = vmatpush1.msra.mxu0 %v265
    %409 = vmatprep.subr.mxu0 0.0
    %410 = vmatpush1.msra.mxu0 0.0
    %411 = vmatprep.subr.mxu0 0.0
    %412 = vmatpush1.msra.mxu0 0.0
    %413 = vmatprep.subr.mxu0 0.0
    %414 = vmatpush1.msra.mxu0 0.0
    %415 = vmatprep.subr.mxu0 0.0
    %416 = vmatpush1.msra.mxu0 0.0
    %417 = vmatprep.subr.mxu0 0.0
    %418 = vmatpush1.msra.mxu0 0.0
    %419 = vmatprep.subr.mxu0 0.0
    %420 = vmatpush1.msra.mxu0 0.0
    %421 = vmatprep.subr.mxu0 0.0
    %422 = vmatpush1.msra.mxu0 0.0
    %423 = vmatprep.subr.mxu0 0.0
    %424 = vmatpush1.msra.mxu0 0.0
    %425 = vmatprep.subr.mxu0 0.0
    %426 = vmatpush1.msra.mxu0 0.0
    %427 = vmatprep.subr.mxu0 0.0
    %428 = vmatpush1.msra.mxu0 0.0
    %429 = vmatprep.subr.mxu0 0.0
    %430 = vmatpush1.msra.mxu0 0.0
    %431 = vmatprep.subr.mxu0 0.0
    %432 = vmatpush1.msra.mxu0 0.0
    %433 = vmatprep.subr.mxu0 0.0
    %434 = vmatpush1.msra.mxu0 0.0
    %435 = vmatprep.subr.mxu0 0.0
    %436 = vmatpush1.msra.mxu0 0.0
    %437 = vmatprep.subr.mxu0 0.0
    %438 = vmatpush1.msra.mxu0 0.0
    %439 = vmatprep.subr.mxu0 0.0
    %440 = vmatpush1.msra.mxu0 0.0
    %441 = vmatprep.mubr.f32.mxu0 0.0
    %442 = vmatmul.mubr.f32.gmra.mrb[0].mxu0 %v146
    %v443 = vpop.f32.mrb[0].mxu0
    %v444 = vadd.f32 %v367, %v443
    %v445 = vpop.f32.mrb[0].mxu0
    %v446 = vadd.f32 %v369, %v445
    %447 = vmatprep.mubr.f32.mxu0 0.0
    %448 = vmatmul.mubr.f32.gmra.mrb[0].mxu0 %v151
    %v449 = vpop.f32.mrb[0].mxu0
    %v450 = vadd.f32 %v373, %v449
    %v451 = vpop.f32.mrb[0].mxu0
    %v452 = vadd.f32 %v375, %v451
    %453 = vdwg.mxu0
    %s454 = scalar_lea.vmem [#allocation2], 512
    %v455 = vld [vmem:[%s454] sm:$0xff]
    %v456 = vld [vmem:[%s454 + $0x8] sm:$0xff]
    %v457 = vld [vmem:[%s454 + $0x10] sm:$0xff]
    %v458 = vld [vmem:[%s454 + $0x18] sm:$0xff]
    %v459 = vld [vmem:[%s454 + $0x20] sm:$0xff]
    %v460 = vld [vmem:[%s454 + $0x28] sm:$0xff]
    %v461 = vld [vmem:[%s454 + $0x30] sm:$0xff]
    %v462 = vld [vmem:[%s454 + $0x38] sm:$0xff]
    %v463 = vld [vmem:[%s454 + $0x40] sm:$0xff]
    %v464 = vld [vmem:[%s454 + $0x48] sm:$0xff]
    %v465 = vld [vmem:[%s454 + $0x50] sm:$0xff]
    %v466 = vld [vmem:[%s454 + $0x58] sm:$0xff]
    %v467 = vld [vmem:[%s454 + $0x60] sm:$0xff]
    %v468 = vld [vmem:[%s454 + $0x68] sm:$0xff]
    %v469 = vld [vmem:[%s454 + $0x70] sm:$0xff]
    %v470 = vld [vmem:[%s454 + $0x78] sm:$0xff]
    %v471 = vld [vmem:[%s454 + $0x80] sm:$0xff]
    %v472 = vld [vmem:[%s454 + $0x88] sm:$0xff]
    %v473 = vld [vmem:[%s454 + $0x90] sm:$0xff]
    %v474 = vld [vmem:[%s454 + $0x98] sm:$0xff]
    %v475 = vld [vmem:[%s454 + $0xa0] sm:$0xff]
    %v476 = vld [vmem:[%s454 + $0xa8] sm:$0xff]
    %v477 = vld [vmem:[%s454 + $0xb0] sm:$0xff]
    %v478 = vld [vmem:[%s454 + $0xb8] sm:$0xff]
    %v479 = vld [vmem:[%s454 + $0xc0] sm:$0xff]
    %v480 = vld [vmem:[%s454 + $0xc8] sm:$0xff]
    %v481 = vld [vmem:[%s454 + $0xd0] sm:$0xff]
    %v482 = vld [vmem:[%s454 + $0xd8] sm:$0xff]
    %v483 = vld [vmem:[%s454 + $0xe0] sm:$0xff]
    %v484 = vld [vmem:[%s454 + $0xe8] sm:$0xff]
    %v485 = vld [vmem:[%s454 + $0xf0] sm:$0xff]
    %v486 = vld [vmem:[%s454 + $0xf8] sm:$0xff]
    %487 = vmatprep.subr.mxu0 %v456
    %488 = vmatpush1.msra.mxu0 %v455
    %489 = vmatprep.subr.mxu0 %v458
    %490 = vmatpush1.msra.mxu0 %v457
    %491 = vmatprep.subr.mxu0 %v460
    %492 = vmatpush1.msra.mxu0 %v459
    %493 = vmatprep.subr.mxu0 %v462
    %494 = vmatpush1.msra.mxu0 %v461
    %495 = vmatprep.subr.mxu0 %v464
    %496 = vmatpush1.msra.mxu0 %v463
    %497 = vmatprep.subr.mxu0 %v466
    %498 = vmatpush1.msra.mxu0 %v465
    %499 = vmatprep.subr.mxu0 %v468
    %500 = vmatpush1.msra.mxu0 %v467
    %501 = vmatprep.subr.mxu0 %v470
    %502 = vmatpush1.msra.mxu0 %v469
    %503 = vmatprep.subr.mxu0 %v472
    %504 = vmatpush1.msra.mxu0 %v471
    %505 = vmatprep.subr.mxu0 %v474
    %506 = vmatpush1.msra.mxu0 %v473
    %507 = vmatprep.subr.mxu0 %v476
    %508 = vmatpush1.msra.mxu0 %v475
    %509 = vmatprep.subr.mxu0 %v478
    %510 = vmatpush1.msra.mxu0 %v477
    %511 = vmatprep.subr.mxu0 %v480
    %512 = vmatpush1.msra.mxu0 %v479
    %513 = vmatprep.subr.mxu0 %v482
    %514 = vmatpush1.msra.mxu0 %v481
    %515 = vmatprep.subr.mxu0 %v484
    %516 = vmatpush1.msra.mxu0 %v483
    %517 = vmatprep.subr.mxu0 %v486
    %518 = vmatpush1.msra.mxu0 %v485
    %519 = vmatprep.subr.mxu0 0.0
    %520 = vmatpush1.msra.mxu0 0.0
    %521 = vmatprep.subr.mxu0 0.0
    %522 = vmatpush1.msra.mxu0 0.0
    %523 = vmatprep.subr.mxu0 0.0
    %524 = vmatpush1.msra.mxu0 0.0
    %525 = vmatprep.subr.mxu0 0.0
    %526 = vmatpush1.msra.mxu0 0.0
    %527 = vmatprep.subr.mxu0 0.0
    %528 = vmatpush1.msra.mxu0 0.0
    %529 = vmatprep.subr.mxu0 0.0
    %530 = vmatpush1.msra.mxu0 0.0
    %531 = vmatprep.subr.mxu0 0.0
    %532 = vmatpush1.msra.mxu0 0.0
    %533 = vmatprep.subr.mxu0 0.0
    %534 = vmatpush1.msra.mxu0 0.0
    %535 = vmatprep.subr.mxu0 0.0
    %536 = vmatpush1.msra.mxu0 0.0
    %537 = vmatprep.subr.mxu0 0.0
    %538 = vmatpush1.msra.mxu0 0.0
    %539 = vmatprep.subr.mxu0 0.0
    %540 = vmatpush1.msra.mxu0 0.0
    %541 = vmatprep.subr.mxu0 0.0
    %542 = vmatpush1.msra.mxu0 0.0
    %543 = vmatprep.subr.mxu0 0.0
    %544 = vmatpush1.msra.mxu0 0.0
    %545 = vmatprep.subr.mxu0 0.0
    %546 = vmatpush1.msra.mxu0 0.0
    %547 = vmatprep.subr.mxu0 0.0
    %548 = vmatpush1.msra.mxu0 0.0
    %549 = vmatprep.subr.mxu0 0.0
    %550 = vmatpush1.msra.mxu0 0.0
    %551 = vmatprep.mubr.f32.mxu0 0.0
    %552 = vmatmul.mubr.f32.gmra.mrb[0].mxu0 %v227
    %v553 = vpop.f32.mrb[0].mxu0
    %v554 = vadd.f32 0.0, %v553
    %v555 = vpop.f32.mrb[0].mxu0
    %v556 = vadd.f32 0.0, %v555
    %557 = vmatprep.mubr.f32.mxu0 0.0
    %558 = vmatmul.mubr.f32.gmra.mrb[0].mxu0 %v232
    %v559 = vpop.f32.mrb[0].mxu0
    %v560 = vadd.f32 0.0, %v559
    %v561 = vpop.f32.mrb[0].mxu0
    %v562 = vadd.f32 0.0, %v561
    %563 = vdwg.mxu0
    %v564 = vadd.f32 %v444, %v554
    %v565 = vadd.f32 %v446, %v556
    %v566 = vadd.f32 %v450, %v560
    %v567 = vadd.f32 %v452, %v562
    %v569 = vlaneseq
    %v570 = vshrl.u32 %v569, 7
    %v571 = vsub.s32 0, %v570
    %v572 = vrot.slane %v71, %v571
    %v573 = vlaneseq
    %v574 = vshrl.u32 %v573, 7
    %v575 = vsub.s32 1, %v574
    %v576 = vrot.slane %v71, %v575
    %v579 = vadd.f32 %v564, %v572
    %v580 = vadd.f32 %v565, %v576
    %v581 = vadd.f32 %v566, %v572
    %v582 = vadd.f32 %v567, %v576
    %v583 = vmax.f32 %v579, 0.0
    %v584 = vmax.f32 %v580, 0.0
    %v585 = vmax.f32 %v581, 0.0
    %v586 = vmax.f32 %v582, 0.0
    %v587 = vld [vmem:[%s4] sm:$0x1]
    %588 = vmatprep.subr.mxu0 %v584
    %589 = vmatpush1.msra.mxu0 %v583
    %590 = vmatprep.subr.mxu0 %v586
    %591 = vmatpush1.msra.mxu0 %v585
    %592 = vmatprep.subr.mxu0 0.0
    %593 = vmatpush1.msra.mxu0 0.0
    %594 = vmatprep.subr.mxu0 0.0
    %595 = vmatpush1.msra.mxu0 0.0
    %596 = vmatprep.subr.mxu0 0.0
    %597 = vmatpush1.msra.mxu0 0.0
    %598 = vmatprep.subr.mxu0 0.0
    %599 = vmatpush1.msra.mxu0 0.0
    %600 = vmatprep.subr.mxu0 0.0
    %601 = vmatpush1.msra.mxu0 0.0
    %602 = vmatprep.subr.mxu0 0.0
    %603 = vmatpush1.msra.mxu0 0.0
    %604 = vmatprep.subr.mxu0 0.0
    %605 = vmatpush1.msra.mxu0 0.0
    %606 = vmatprep.subr.mxu0 0.0
    %607 = vmatpush1.msra.mxu0 0.0
    %608 = vmatprep.subr.mxu0 0.0
    %609 = vmatpush1.msra.mxu0 0.0
    %610 = vmatprep.subr.mxu0 0.0
    %611 = vmatpush1.msra.mxu0 0.0
    %612 = vmatprep.subr.mxu0 0.0
    %613 = vmatpush1.msra.mxu0 0.0
    %614 = vmatprep.subr.mxu0 0.0
    %615 = vmatpush1.msra.mxu0 0.0
    %616 = vmatprep.subr.mxu0 0.0
    %617 = vmatpush1.msra.mxu0 0.0
    %618 = vmatprep.subr.mxu0 0.0
    %619 = vmatpush1.msra.mxu0 0.0
    %620 = vmatprep.subr.mxu0 0.0
    %621 = vmatpush1.msra.mxu0 0.0
    %622 = vmatprep.subr.mxu0 0.0
    %623 = vmatpush1.msra.mxu0 0.0
    %624 = vmatprep.subr.mxu0 0.0
    %625 = vmatpush1.msra.mxu0 0.0
    %626 = vmatprep.subr.mxu0 0.0
    %627 = vmatpush1.msra.mxu0 0.0
    %628 = vmatprep.subr.mxu0 0.0
    %629 = vmatpush1.msra.mxu0 0.0
    %630 = vmatprep.subr.mxu0 0.0
    %631 = vmatpush1.msra.mxu0 0.0
    %632 = vmatprep.subr.mxu0 0.0
    %633 = vmatpush1.msra.mxu0 0.0
    %634 = vmatprep.subr.mxu0 0.0
    %635 = vmatpush1.msra.mxu0 0.0
    %636 = vmatprep.subr.mxu0 0.0
    %637 = vmatpush1.msra.mxu0 0.0
    %638 = vmatprep.subr.mxu0 0.0
    %639 = vmatpush1.msra.mxu0 0.0
    %640 = vmatprep.subr.mxu0 0.0
    %641 = vmatpush1.msra.mxu0 0.0
    %642 = vmatprep.subr.mxu0 0.0
    %643 = vmatpush1.msra.mxu0 0.0
    %644 = vmatprep.subr.mxu0 0.0
    %645 = vmatpush1.msra.mxu0 0.0
    %646 = vmatprep.subr.mxu0 0.0
    %647 = vmatpush1.msra.mxu0 0.0
    %648 = vmatprep.subr.mxu0 0.0
    %649 = vmatpush1.msra.mxu0 0.0
    %650 = vmatprep.subr.mxu0 0.0
    %651 = vmatpush1.msra.mxu0 0.0
    %652 = vmatprep.mubr.f32.mxu0 0.0
    %653 = vmatmul.mubr.f32.gmra.mrb[0].mxu0 %v74
    %v654 = vpop.f32.mrb[0].mxu0
    %v655 = vadd.f32 0.0, %v654
    %v656 = vpop.f32.mrb[0].mxu0
    %v657 = vadd.f32 0.0, %v656
    %658 = vmatprep.mubr.f32.mxu0 0.0
    %659 = vmatmul.mubr.f32.gmra.mrb[0].mxu0 %v77
    %v660 = vpop.f32.mrb[0].mxu0
    %v661 = vadd.f32 0.0, %v660
    %v662 = vpop.f32.mrb[0].mxu0
    %v663 = vadd.f32 0.0, %v662
    %664 = vdwg.mxu0
    %665 = vmatprep.subr.mxu0 %v584
    %666 = vmatpush1.msra.mxu0 %v583
    %667 = vmatprep.subr.mxu0 %v586
    %668 = vmatpush1.msra.mxu0 %v585
    %669 = vmatprep.subr.mxu0 0.0
    %670 = vmatpush1.msra.mxu0 0.0
    %671 = vmatprep.subr.mxu0 0.0
    %672 = vmatpush1.msra.mxu0 0.0
    %673 = vmatprep.subr.mxu0 0.0
    %674 = vmatpush1.msra.mxu0 0.0
    %675 = vmatprep.subr.mxu0 0.0
    %676 = vmatpush1.msra.mxu0 0.0
    %677 = vmatprep.subr.mxu0 0.0
    %678 = vmatpush1.msra.mxu0 0.0
    %679 = vmatprep.subr.mxu0 0.0
    %680 = vmatpush1.msra.mxu0 0.0
    %681 = vmatprep.subr.mxu0 0.0
    %682 = vmatpush1.msra.mxu0 0.0
    %683 = vmatprep.subr.mxu0 0.0
    %684 = vmatpush1.msra.mxu0 0.0
    %685 = vmatprep.subr.mxu0 0.0
    %686 = vmatpush1.msra.mxu0 0.0
    %687 = vmatprep.subr.mxu0 0.0
    %688 = vmatpush1.msra.mxu0 0.0
    %689 = vmatprep.subr.mxu0 0.0
    %690 = vmatpush1.msra.mxu0 0.0
    %691 = vmatprep.subr.mxu0 0.0
    %692 = vmatpush1.msra.mxu0 0.0
    %693 = vmatprep.subr.mxu0 0.0
    %694 = vmatpush1.msra.mxu0 0.0
    %695 = vmatprep.subr.mxu0 0.0
    %696 = vmatpush1.msra.mxu0 0.0
    %697 = vmatprep.subr.mxu0 0.0
    %698 = vmatpush1.msra.mxu0 0.0
    %699 = vmatprep.subr.mxu0 0.0
    %700 = vmatpush1.msra.mxu0 0.0
    %701 = vmatprep.subr.mxu0 0.0
    %702 = vmatpush1.msra.mxu0 0.0
    %703 = vmatprep.subr.mxu0 0.0
    %704 = vmatpush1.msra.mxu0 0.0
    %705 = vmatprep.subr.mxu0 0.0
    %706 = vmatpush1.msra.mxu0 0.0
    %707 = vmatprep.subr.mxu0 0.0
    %708 = vmatpush1.msra.mxu0 0.0
    %709 = vmatprep.subr.mxu0 0.0
    %710 = vmatpush1.msra.mxu0 0.0
    %711 = vmatprep.subr.mxu0 0.0
    %712 = vmatpush1.msra.mxu0 0.0
    %713 = vmatprep.subr.mxu0 0.0
    %714 = vmatpush1.msra.mxu0 0.0
    %715 = vmatprep.subr.mxu0 0.0
    %716 = vmatpush1.msra.mxu0 0.0
    %717 = vmatprep.subr.mxu0 0.0
    %718 = vmatpush1.msra.mxu0 0.0
    %719 = vmatprep.subr.mxu0 0.0
    %720 = vmatpush1.msra.mxu0 0.0
    %721 = vmatprep.subr.mxu0 0.0
    %722 = vmatpush1.msra.mxu0 0.0
    %723 = vmatprep.subr.mxu0 0.0
    %724 = vmatpush1.msra.mxu0 0.0
    %725 = vmatprep.subr.mxu0 0.0
    %726 = vmatpush1.msra.mxu0 0.0
    %727 = vmatprep.subr.mxu0 0.0
    %728 = vmatpush1.msra.mxu0 0.0
    %729 = vmatprep.mubr.f32.mxu0 0.0
    %730 = vmatmul.mubr.f32.gmra.mrb[0].mxu0 %v155
    %v731 = vpop.f32.mrb[0].mxu0
    %v732 = vadd.f32 0.0, %v731
    %v733 = vpop.f32.mrb[0].mxu0
    %v734 = vadd.f32 0.0, %v733
    %735 = vmatprep.mubr.f32.mxu0 0.0
    %736 = vmatmul.mubr.f32.gmra.mrb[0].mxu0 %v158
    %v737 = vpop.f32.mrb[0].mxu0
    %v738 = vadd.f32 0.0, %v737
    %v739 = vpop.f32.mrb[0].mxu0
    %v740 = vadd.f32 0.0, %v739
    %741 = vdwg.mxu0
    %v742 = vld [vmem:[#allocation4] sm:$0xff]
    %v743 = vld [vmem:[#allocation4 + $0x8] sm:$0xff]
    %v744 = vld [vmem:[#allocation4 + $0x10] sm:$0xff]
    %v745 = vld [vmem:[#allocation4 + $0x18] sm:$0xff]
    %v746 = vld [vmem:[#allocation4 + $0x20] sm:$0xff]
    %v747 = vld [vmem:[#allocation4 + $0x28] sm:$0xff]
    %v748 = vld [vmem:[#allocation4 + $0x30] sm:$0xff]
    %v749 = vld [vmem:[#allocation4 + $0x38] sm:$0xff]
    %v750 = vld [vmem:[#allocation4 + $0x40] sm:$0xff]
    %v751 = vld [vmem:[#allocation4 + $0x48] sm:$0xff]
    %v752 = vld [vmem:[#allocation4 + $0x50] sm:$0xff]
    %v753 = vld [vmem:[#allocation4 + $0x58] sm:$0xff]
    %v754 = vld [vmem:[#allocation4 + $0x60] sm:$0xff]
    %v755 = vld [vmem:[#allocation4 + $0x68] sm:$0xff]
    %v756 = vld [vmem:[#allocation4 + $0x70] sm:$0xff]
    %v757 = vld [vmem:[#allocation4 + $0x78] sm:$0xff]
    %v758 = vld [vmem:[#allocation4 + $0x80] sm:$0xff]
    %v759 = vld [vmem:[#allocation4 + $0x88] sm:$0xff]
    %v760 = vld [vmem:[#allocation4 + $0x90] sm:$0xff]
    %v761 = vld [vmem:[#allocation4 + $0x98] sm:$0xff]
    %v762 = vld [vmem:[#allocation4 + $0xa0] sm:$0xff]
    %v763 = vld [vmem:[#allocation4 + $0xa8] sm:$0xff]
    %v764 = vld [vmem:[#allocation4 + $0xb0] sm:$0xff]
    %v765 = vld [vmem:[#allocation4 + $0xb8] sm:$0xff]
    %v766 = vld [vmem:[#allocation4 + $0xc0] sm:$0xff]
    %v767 = vld [vmem:[#allocation4 + $0xc8] sm:$0xff]
    %v768 = vld [vmem:[#allocation4 + $0xd0] sm:$0xff]
    %v769 = vld [vmem:[#allocation4 + $0xd8] sm:$0xff]
    %v770 = vld [vmem:[#allocation4 + $0xe0] sm:$0xff]
    %v771 = vld [vmem:[#allocation4 + $0xe8] sm:$0xff]
    %v772 = vld [vmem:[#allocation4 + $0xf0] sm:$0xff]
    %v773 = vld [vmem:[#allocation4 + $0xf8] sm:$0xff]
    %s774 = scalar_lea.vmem [#allocation4], 256
    %v775 = vld [vmem:[%s774] sm:$0xff]
    %v776 = vld [vmem:[%s774 + $0x8] sm:$0xff]
    %v777 = vld [vmem:[%s774 + $0x10] sm:$0xff]
    %v778 = vld [vmem:[%s774 + $0x18] sm:$0xff]
    %v779 = vld [vmem:[%s774 + $0x20] sm:$0xff]
    %v780 = vld [vmem:[%s774 + $0x28] sm:$0xff]
    %v781 = vld [vmem:[%s774 + $0x30] sm:$0xff]
    %v782 = vld [vmem:[%s774 + $0x38] sm:$0xff]
    %v783 = vld [vmem:[%s774 + $0x40] sm:$0xff]
    %v784 = vld [vmem:[%s774 + $0x48] sm:$0xff]
    %v785 = vld [vmem:[%s774 + $0x50] sm:$0xff]
    %v786 = vld [vmem:[%s774 + $0x58] sm:$0xff]
    %v787 = vld [vmem:[%s774 + $0x60] sm:$0xff]
    %v788 = vld [vmem:[%s774 + $0x68] sm:$0xff]
    %v789 = vld [vmem:[%s774 + $0x70] sm:$0xff]
    %v790 = vld [vmem:[%s774 + $0x78] sm:$0xff]
    %v791 = vld [vmem:[%s774 + $0x80] sm:$0xff]
    %v792 = vld [vmem:[%s774 + $0x88] sm:$0xff]
    %v793 = vld [vmem:[%s774 + $0x90] sm:$0xff]
    %v794 = vld [vmem:[%s774 + $0x98] sm:$0xff]
    %v795 = vld [vmem:[%s774 + $0xa0] sm:$0xff]
    %v796 = vld [vmem:[%s774 + $0xa8] sm:$0xff]
    %v797 = vld [vmem:[%s774 + $0xb0] sm:$0xff]
    %v798 = vld [vmem:[%s774 + $0xb8] sm:$0xff]
    %v799 = vld [vmem:[%s774 + $0xc0] sm:$0xff]
    %v800 = vld [vmem:[%s774 + $0xc8] sm:$0xff]
    %v801 = vld [vmem:[%s774 + $0xd0] sm:$0xff]
    %v802 = vld [vmem:[%s774 + $0xd8] sm:$0xff]
    %v803 = vld [vmem:[%s774 + $0xe0] sm:$0xff]
    %v804 = vld [vmem:[%s774 + $0xe8] sm:$0xff]
    %v805 = vld [vmem:[%s774 + $0xf0] sm:$0xff]
    %v806 = vld [vmem:[%s774 + $0xf8] sm:$0xff]
    %807 = vmatprep.subr.mxu0 0.0
    %808 = vmatpush1.msra.mxu0 %v775
    %809 = vmatprep.subr.mxu0 0.0
    %810 = vmatpush1.msra.mxu0 %v776
    %811 = vmatprep.subr.mxu0 0.0
    %812 = vmatpush1.msra.mxu0 %v777
    %813 = vmatprep.subr.mxu0 0.0
    %814 = vmatpush1.msra.mxu0 %v778
    %815 = vmatprep.subr.mxu0 0.0
    %816 = vmatpush1.msra.mxu0 %v779
    %817 = vmatprep.subr.mxu0 0.0
    %818 = vmatpush1.msra.mxu0 %v780
    %819 = vmatprep.subr.mxu0 0.0
    %820 = vmatpush1.msra.mxu0 %v781
    %821 = vmatprep.subr.mxu0 0.0
    %822 = vmatpush1.msra.mxu0 %v782
    %823 = vmatprep.subr.mxu0 0.0
    %824 = vmatpush1.msra.mxu0 %v783
    %825 = vmatprep.subr.mxu0 0.0
    %826 = vmatpush1.msra.mxu0 %v784
    %827 = vmatprep.subr.mxu0 0.0
    %828 = vmatpush1.msra.mxu0 %v785
    %829 = vmatprep.subr.mxu0 0.0
    %830 = vmatpush1.msra.mxu0 %v786
    %831 = vmatprep.subr.mxu0 0.0
    %832 = vmatpush1.msra.mxu0 %v787
    %833 = vmatprep.subr.mxu0 0.0
    %834 = vmatpush1.msra.mxu0 %v788
    %835 = vmatprep.subr.mxu0 0.0
    %836 = vmatpush1.msra.mxu0 %v789
    %837 = vmatprep.subr.mxu0 0.0
    %838 = vmatpush1.msra.mxu0 %v790
    %839 = vmatprep.subr.mxu0 0.0
    %840 = vmatpush1.msra.mxu0 %v791
    %841 = vmatprep.subr.mxu0 0.0
    %842 = vmatpush1.msra.mxu0 %v792
    %843 = vmatprep.subr.mxu0 0.0
    %844 = vmatpush1.msra.mxu0 %v793
    %845 = vmatprep.subr.mxu0 0.0
    %846 = vmatpush1.msra.mxu0 %v794
    %847 = vmatprep.subr.mxu0 0.0
    %848 = vmatpush1.msra.mxu0 %v795
    %849 = vmatprep.subr.mxu0 0.0
    %850 = vmatpush1.msra.mxu0 %v796
    %851 = vmatprep.subr.mxu0 0.0
    %852 = vmatpush1.msra.mxu0 %v797
    %853 = vmatprep.subr.mxu0 0.0
    %854 = vmatpush1.msra.mxu0 %v798
    %855 = vmatprep.subr.mxu0 0.0
    %856 = vmatpush1.msra.mxu0 %v799
    %857 = vmatprep.subr.mxu0 0.0
    %858 = vmatpush1.msra.mxu0 %v800
    %859 = vmatprep.subr.mxu0 0.0
    %860 = vmatpush1.msra.mxu0 %v801
    %861 = vmatprep.subr.mxu0 0.0
    %862 = vmatpush1.msra.mxu0 %v802
    %863 = vmatprep.subr.mxu0 0.0
    %864 = vmatpush1.msra.mxu0 %v803
    %865 = vmatprep.subr.mxu0 0.0
    %866 = vmatpush1.msra.mxu0 %v804
    %867 = vmatprep.subr.mxu0 0.0
    %868 = vmatpush1.msra.mxu0 %v805
    %869 = vmatprep.subr.mxu0 0.0
    %870 = vmatpush1.msra.mxu0 %v806
    %871 = vmatprep.mubr.f32.mxu0 %v584
    %872 = vmatmul.mubr.f32.gmra.mrb[0].mxu0 %v583
    %v873 = vpop.f32.mrb[0].mxu0
    %v874 = vadd.f32 0.0, %v873
    %v875 = vpop.f32.mrb[0].mxu0
    %876 = vmatprep.mubr.f32.mxu0 %v586
    %877 = vmatmul.mubr.f32.gmra.mrb[0].mxu0 %v585
    %v878 = vpop.f32.mrb[0].mxu0
    %v879 = vadd.f32 0.0, %v878
    %v880 = vpop.f32.mrb[0].mxu0
    %881 = vdwg.mxu0
    %882 = vmatprep.subr.mxu0 0.0
    %883 = vmatpush1.msra.mxu0 %v742
    %884 = vmatprep.subr.mxu0 0.0
    %885 = vmatpush1.msra.mxu0 %v743
    %886 = vmatprep.subr.mxu0 0.0
    %887 = vmatpush1.msra.mxu0 %v744
    %888 = vmatprep.subr.mxu0 0.0
    %889 = vmatpush1.msra.mxu0 %v745
    %890 = vmatprep.subr.mxu0 0.0
    %891 = vmatpush1.msra.mxu0 %v746
    %892 = vmatprep.subr.mxu0 0.0
    %893 = vmatpush1.msra.mxu0 %v747
    %894 = vmatprep.subr.mxu0 0.0
    %895 = vmatpush1.msra.mxu0 %v748
    %896 = vmatprep.subr.mxu0 0.0
    %897 = vmatpush1.msra.mxu0 %v749
    %898 = vmatprep.subr.mxu0 0.0
    %899 = vmatpush1.msra.mxu0 %v750
    %900 = vmatprep.subr.mxu0 0.0
    %901 = vmatpush1.msra.mxu0 %v751
    %902 = vmatprep.subr.mxu0 0.0
    %903 = vmatpush1.msra.mxu0 %v752
    %904 = vmatprep.subr.mxu0 0.0
    %905 = vmatpush1.msra.mxu0 %v753
    %906 = vmatprep.subr.mxu0 0.0
    %907 = vmatpush1.msra.mxu0 %v754
    %908 = vmatprep.subr.mxu0 0.0
    %909 = vmatpush1.msra.mxu0 %v755
    %910 = vmatprep.subr.mxu0 0.0
    %911 = vmatpush1.msra.mxu0 %v756
    %912 = vmatprep.subr.mxu0 0.0
    %913 = vmatpush1.msra.mxu0 %v757
    %914 = vmatprep.subr.mxu0 0.0
    %915 = vmatpush1.msra.mxu0 %v758
    %916 = vmatprep.subr.mxu0 0.0
    %917 = vmatpush1.msra.mxu0 %v759
    %918 = vmatprep.subr.mxu0 0.0
    %919 = vmatpush1.msra.mxu0 %v760
    %920 = vmatprep.subr.mxu0 0.0
    %921 = vmatpush1.msra.mxu0 %v761
    %922 = vmatprep.subr.mxu0 0.0
    %923 = vmatpush1.msra.mxu0 %v762
    %924 = vmatprep.subr.mxu0 0.0
    %925 = vmatpush1.msra.mxu0 %v763
    %926 = vmatprep.subr.mxu0 0.0
    %927 = vmatpush1.msra.mxu0 %v764
    %928 = vmatprep.subr.mxu0 0.0
    %929 = vmatpush1.msra.mxu0 %v765
    %930 = vmatprep.subr.mxu0 0.0
    %931 = vmatpush1.msra.mxu0 %v766
    %932 = vmatprep.subr.mxu0 0.0
    %933 = vmatpush1.msra.mxu0 %v767
    %934 = vmatprep.subr.mxu0 0.0
    %935 = vmatpush1.msra.mxu0 %v768
    %936 = vmatprep.subr.mxu0 0.0
    %937 = vmatpush1.msra.mxu0 %v769
    %938 = vmatprep.subr.mxu0 0.0
    %939 = vmatpush1.msra.mxu0 %v770
    %940 = vmatprep.subr.mxu0 0.0
    %941 = vmatpush1.msra.mxu0 %v771
    %942 = vmatprep.subr.mxu0 0.0
    %943 = vmatpush1.msra.mxu0 %v772
    %944 = vmatprep.subr.mxu0 0.0
    %945 = vmatpush1.msra.mxu0 %v773
    %946 = vmatprep.mubr.f32.mxu0 %v657
    %947 = vmatmul.mubr.f32.gmra.mrb[0].mxu0 %v655
    %v948 = vpop.f32.mrb[0].mxu0
    %v949 = vadd.f32 %v874, %v948
    %v950 = vpop.f32.mrb[0].mxu0
    %951 = vmatprep.mubr.f32.mxu0 %v663
    %952 = vmatmul.mubr.f32.gmra.mrb[0].mxu0 %v661
    %v953 = vpop.f32.mrb[0].mxu0
    %v954 = vadd.f32 %v879, %v953
    %v955 = vpop.f32.mrb[0].mxu0
    %956 = vdwg.mxu0
    %s957 = scalar_lea.vmem [#allocation4], 512
    %v958 = vld [vmem:[%s957] sm:$0xff]
    %v959 = vld [vmem:[%s957 + $0x8] sm:$0xff]
    %v960 = vld [vmem:[%s957 + $0x10] sm:$0xff]
    %v961 = vld [vmem:[%s957 + $0x18] sm:$0xff]
    %v962 = vld [vmem:[%s957 + $0x20] sm:$0xff]
    %v963 = vld [vmem:[%s957 + $0x28] sm:$0xff]
    %v964 = vld [vmem:[%s957 + $0x30] sm:$0xff]
    %v965 = vld [vmem:[%s957 + $0x38] sm:$0xff]
    %v966 = vld [vmem:[%s957 + $0x40] sm:$0xff]
    %v967 = vld [vmem:[%s957 + $0x48] sm:$0xff]
    %v968 = vld [vmem:[%s957 + $0x50] sm:$0xff]
    %v969 = vld [vmem:[%s957 + $0x58] sm:$0xff]
    %v970 = vld [vmem:[%s957 + $0x60] sm:$0xff]
    %v971 = vld [vmem:[%s957 + $0x68] sm:$0xff]
    %v972 = vld [vmem:[%s957 + $0x70] sm:$0xff]
    %v973 = vld [vmem:[%s957 + $0x78] sm:$0xff]
    %v974 = vld [vmem:[%s957 + $0x80] sm:$0xff]
    %v975 = vld [vmem:[%s957 + $0x88] sm:$0xff]
    %v976 = vld [vmem:[%s957 + $0x90] sm:$0xff]
    %v977 = vld [vmem:[%s957 + $0x98] sm:$0xff]
    %v978 = vld [vmem:[%s957 + $0xa0] sm:$0xff]
    %v979 = vld [vmem:[%s957 + $0xa8] sm:$0xff]
    %v980 = vld [vmem:[%s957 + $0xb0] sm:$0xff]
    %v981 = vld [vmem:[%s957 + $0xb8] sm:$0xff]
    %v982 = vld [vmem:[%s957 + $0xc0] sm:$0xff]
    %v983 = vld [vmem:[%s957 + $0xc8] sm:$0xff]
    %v984 = vld [vmem:[%s957 + $0xd0] sm:$0xff]
    %v985 = vld [vmem:[%s957 + $0xd8] sm:$0xff]
    %v986 = vld [vmem:[%s957 + $0xe0] sm:$0xff]
    %v987 = vld [vmem:[%s957 + $0xe8] sm:$0xff]
    %v988 = vld [vmem:[%s957 + $0xf0] sm:$0xff]
    %v989 = vld [vmem:[%s957 + $0xf8] sm:$0xff]
    %990 = vmatprep.subr.mxu0 0.0
    %991 = vmatpush1.msra.mxu0 %v958
    %992 = vmatprep.subr.mxu0 0.0
    %993 = vmatpush1.msra.mxu0 %v959
    %994 = vmatprep.subr.mxu0 0.0
    %995 = vmatpush1.msra.mxu0 %v960
    %996 = vmatprep.subr.mxu0 0.0
    %997 = vmatpush1.msra.mxu0 %v961
    %998 = vmatprep.subr.mxu0 0.0
    %999 = vmatpush1.msra.mxu0 %v962
    %1000 = vmatprep.subr.mxu0 0.0
    %1001 = vmatpush1.msra.mxu0 %v963
    %1002 = vmatprep.subr.mxu0 0.0
    %1003 = vmatpush1.msra.mxu0 %v964
    %1004 = vmatprep.subr.mxu0 0.0
    %1005 = vmatpush1.msra.mxu0 %v965
    %1006 = vmatprep.subr.mxu0 0.0
    %1007 = vmatpush1.msra.mxu0 %v966
    %1008 = vmatprep.subr.mxu0 0.0
    %1009 = vmatpush1.msra.mxu0 %v967
    %1010 = vmatprep.subr.mxu0 0.0
    %1011 = vmatpush1.msra.mxu0 %v968
    %1012 = vmatprep.subr.mxu0 0.0
    %1013 = vmatpush1.msra.mxu0 %v969
    %1014 = vmatprep.subr.mxu0 0.0
    %1015 = vmatpush1.msra.mxu0 %v970
    %1016 = vmatprep.subr.mxu0 0.0
    %1017 = vmatpush1.msra.mxu0 %v971
    %1018 = vmatprep.subr.mxu0 0.0
    %1019 = vmatpush1.msra.mxu0 %v972
    %1020 = vmatprep.subr.mxu0 0.0
    %1021 = vmatpush1.msra.mxu0 %v973
    %1022 = vmatprep.subr.mxu0 0.0
    %1023 = vmatpush1.msra.mxu0 %v974
    %1024 = vmatprep.subr.mxu0 0.0
    %1025 = vmatpush1.msra.mxu0 %v975
    %1026 = vmatprep.subr.mxu0 0.0
    %1027 = vmatpush1.msra.mxu0 %v976
    %1028 = vmatprep.subr.mxu0 0.0
    %1029 = vmatpush1.msra.mxu0 %v977
    %1030 = vmatprep.subr.mxu0 0.0
    %1031 = vmatpush1.msra.mxu0 %v978
    %1032 = vmatprep.subr.mxu0 0.0
    %1033 = vmatpush1.msra.mxu0 %v979
    %1034 = vmatprep.subr.mxu0 0.0
    %1035 = vmatpush1.msra.mxu0 %v980
    %1036 = vmatprep.subr.mxu0 0.0
    %1037 = vmatpush1.msra.mxu0 %v981
    %1038 = vmatprep.subr.mxu0 0.0
    %1039 = vmatpush1.msra.mxu0 %v982
    %1040 = vmatprep.subr.mxu0 0.0
    %1041 = vmatpush1.msra.mxu0 %v983
    %1042 = vmatprep.subr.mxu0 0.0
    %1043 = vmatpush1.msra.mxu0 %v984
    %1044 = vmatprep.subr.mxu0 0.0
    %1045 = vmatpush1.msra.mxu0 %v985
    %1046 = vmatprep.subr.mxu0 0.0
    %1047 = vmatpush1.msra.mxu0 %v986
    %1048 = vmatprep.subr.mxu0 0.0
    %1049 = vmatpush1.msra.mxu0 %v987
    %1050 = vmatprep.subr.mxu0 0.0
    %1051 = vmatpush1.msra.mxu0 %v988
    %1052 = vmatprep.subr.mxu0 0.0
    %1053 = vmatpush1.msra.mxu0 %v989
    %1054 = vmatprep.mubr.f32.mxu0 %v734
    %1055 = vmatmul.mubr.f32.gmra.mrb[0].mxu0 %v732
    %v1056 = vpop.f32.mrb[0].mxu0
    %v1057 = vadd.f32 0.0, %v1056
    %v1058 = vpop.f32.mrb[0].mxu0
    %1059 = vmatprep.mubr.f32.mxu0 %v740
    %1060 = vmatmul.mubr.f32.gmra.mrb[0].mxu0 %v738
    %v1061 = vpop.f32.mrb[0].mxu0
    %v1062 = vadd.f32 0.0, %v1061
    %v1063 = vpop.f32.mrb[0].mxu0
    %1064 = vdwg.mxu0
    %v1065 = vadd.f32 %v949, %v1057
    %v1066 = vadd.f32 %v954, %v1062
    %v1068 = vlaneseq
    %v1069 = vshrl.u32 %v1068, 7
    %v1070 = vsub.s32 0, %v1069
    %v1071 = vrot.slane %v587, %v1070
    %v1073 = vadd.f32 %v1065, %v1071
    %v1074 = vadd.f32 %v1066, %v1071
    %v1075 = vxor.u32 %v1073, 2147483648
    %v1076 = vxor.u32 %v1074, 2147483648
    %v1077 = vmul.f32 %v1075, 1.442695
    %v1078 = vpow.pop %v1077
    %v1079 = vmul.f32 %v1076, 1.442695
    %v1080 = vpow.pop %v1079
    %v1081 = vadd.f32 %v1078, 1.0
    %v1082 = vadd.f32 %v1080, 1.0
    %v1083 = vrcp.pop %v1081
    %v1084 = vmul.f32 1.0, %v1083
    %v1085 = vrcp.pop %v1082
    %v1086 = vmul.f32 1.0, %v1085
    %1087 = vst [vmem:[%s5] sm:$0xff] %v1084
    %1088 = vst [vmem:[%s5 + $0x8] sm:$0xff] %v1086
    // Predicated region
    $region30: #{autoencoder_forward.1} parent=1 // pred_check
      _
    $region31: #{autoencoder_forward.1} parent=1 // pred_check_branch
      %1090 = sbr.rel (0) target = $region33
    $region32: #{autoencoder_forward.1} parent=1 // pred_region
      _
    $region33: #{autoencoder_forward.1} parent=1 // pred_fallthru
      _
    // Predicated region
    $region34: #{autoencoder_forward.1} parent=1 // pred_check
      _
    $region35: #{autoencoder_forward.1} parent=1 // pred_check_branch
      %1092 = sbr.rel (0) target = $region37
    $region36: #{autoencoder_forward.1} parent=1 // pred_region
      _
    $region37: #{autoencoder_forward.1} parent=1 // pred_fallthru
      _
    %1093 = vsyncpa [#allocation3], 1
    %1094 = vsyncpa [#allocation5], 1

</llo_original>
